<compile_context>
chip_gen: v7x
topology: tpu7x:2x2x1
jax: 0.10.0
libtpu: 0.0.40
codegen_flags: <defaults>
</compile_context>

<pallas_src>
import jax
import jax.numpy as jnp
from jax.experimental import pallas as pl
from jax.experimental.pallas import tpu as pltpu


def _softplus_beta(x, beta, threshold=20.0):
    # PyTorch Softplus(beta): (1/beta) * log(1 + exp(beta * x)), reverting to
    # identity where beta * x > threshold (numerical stability).
    bx = beta * x
    soft = jnp.log1p(jnp.exp(jnp.minimum(bx, threshold))) / beta
    return jnp.where(bx > threshold, x, soft)


def _sde_epistemic_kernel(x_ref, w1_ref, b1_ref, w2_ref, b2_ref, o_ref):
    # x_ref : (D_in, TB) f32   batch-on-lanes tile
    # w1_ref: (H, D_in)  bf16  fc1.weight (VMEM-resident across grid)
    # b1_ref: (H, 1)     f32   fc1.bias as a column (lane-broadcast)
    # w2_ref: (H, 1)     f32   fc2.weight as a column
    # b2_ref: (1,)       f32   fc2.bias, SMEM scalar
    # o_ref : (1, TB)    f32   lane-dense output tile
    x = x_ref[...].astype(jnp.bfloat16)

    # fc1 on the MXU: bf16 operands, single pass, f32 accumulation.
    h = jnp.dot(w1_ref[...], x, preferred_element_type=jnp.float32)   # (H, TB)
    h = h + b1_ref[...]
    h = _softplus_beta(h, 500.0)

    # fc2 has a single output feature: VPU multiply + sublane (XLU) reduction
    # instead of a 1-column MXU matmul.
    y = jnp.sum(h * w2_ref[...], axis=0, keepdims=True) + b2_ref[0]   # (1, TB)
    o_ref[...] = jax.nn.sigmoid(y)


def _round_up(n, m):
    return ((n + m - 1) // m) * m


def sdenet_epistemic_forward(x, w1, b1, w2, b2, *, block_batch=8192):
    """x: (B, D_in); w1: (H, D_in); b1: (H,); w2: (1, H); b2: (1,). Returns (B, 1)."""
    x = jnp.asarray(x, jnp.float32)          # .detach().float() semantics
    B, d_in = x.shape
    H = w1.shape[0]

    # Feature-major relayout: batch on lanes (128-wide fast axis).  The
    # transpose is a single cheap XLA copy (B * d_in * 4 bytes each way) and
    # is far outweighed by the 3-4x reduction of in-kernel vector work.
    xt = x.T                                                  # (D_in, B)
    w1b = jnp.asarray(w1, jnp.float32).astype(jnp.bfloat16)   # (H, D_in)
    b1c = jnp.asarray(b1, jnp.float32).reshape(H, 1)          # (H, 1)
    w2c = jnp.asarray(w2, jnp.float32).reshape(H, 1)          # (H, 1)
    b2s = jnp.asarray(b2, jnp.float32).reshape(1)             # (1,) SMEM scalar

    # Batch tile: multiple of 128 (lane granularity).  Cap at ceil(B/2) so the
    # parallel grid axis has >=2 tiles whenever possible (keeps both v7x
    # TensorCores busy); floor at one 128-lane tile.
    tb_cap = _round_up(-(-B // 2), 128)
    tb = max(128, min(_round_up(block_batch, 128), tb_cap))
    grid = (pl.cdiv(B, tb),)   # partial trailing block handled by Pallas

    out = pl.pallas_call(
        _sde_epistemic_kernel,
        out_shape=jax.ShapeDtypeStruct((1, B), jnp.float32),
        grid=grid,
        in_specs=[
            # x: lane-tiled over the batch -> pipelined (double-buffered).
            pl.BlockSpec((d_in, tb), lambda i: (0, i)),
            # Weights / biases: constant block index -> VMEM-resident, DMA'd once.
            pl.BlockSpec((H, d_in), lambda i: (0, 0)),
            pl.BlockSpec((H, 1), lambda i: (0, 0)),
            pl.BlockSpec((H, 1), lambda i: (0, 0)),
            # fc2 bias scalar lives in SMEM (avoids a padded VMEM tile).
            pl.BlockSpec(memory_space=pltpu.MemorySpace.SMEM),
        ],
        out_specs=pl.BlockSpec((1, tb), lambda i: (0, i)),
        compiler_params=pltpu.CompilerParams(
            # Batch tiles are independent -> shard across TensorCores (v7x).
            dimension_semantics=("parallel",),
        ),
        cost_estimate=pl.CostEstimate(
            flops=2 * B * d_in * H + 4 * B * H,
            transcendentals=3 * B * H + B,
            bytes_accessed=(B * d_in + B) * 4 + H * d_in * 2 + (2 * H + 1) * 4,
        ),
    )(xt, w1b, b1c, w2c, b2s)

    # (1, B) -> (B, 1): contiguous reshape, free.
    return out.reshape(B, 1)


def _kaiming_uniform(key, shape):
    # torch.nn.init.kaiming_uniform_ defaults: a=0, fan_in mode, leaky_relu
    # gain = sqrt(2), bound = gain * sqrt(3 / fan_in)
    fan_in = shape[1]
    bound = jnp.sqrt(2.0) * jnp.sqrt(3.0 / fan_in)
    return jax.random.uniform(key, shape, jnp.float32, -bound, bound)


def _linear_bias_default(key, fan_in, out_features):
    # torch.nn.Linear default bias init: U(-1/sqrt(fan_in), 1/sqrt(fan_in))
    bound = 1.0 / jnp.sqrt(fan_in)
    return jax.random.uniform(key, (out_features,), jnp.float32, -bound, bound)


if __name__ == "__main__":
    # Module-consistent small shapes: m=4, p=3 -> D_in = m*(p+1)+1 = 17,
    # hidden = 2*17 = 34.
    m, p = 4, 3
    d_in = m * (p + 1) + 1
    hidden = int(2 * d_in)
    batch = 8

    key = jax.random.PRNGKey(0)
    k_x, k_w1, k_b1, k_w2, k_b2 = jax.random.split(key, 5)

    x = jax.random.normal(k_x, (batch, d_in), jnp.float32)
    w1 = _kaiming_uniform(k_w1, (hidden, d_in))
    b1 = _linear_bias_default(k_b1, d_in, hidden)
    w2 = _kaiming_uniform(k_w2, (1, hidden))
    b2 = _linear_bias_default(k_b2, hidden, 1)

    def ref_mirror(xv):
        # Mirrors the kernel's numerics (bf16 operands, f32 accumulation for
        # fc1; f32 elementwise fc2) -> tight tolerance.
        h = jnp.dot(xv.astype(jnp.bfloat16), w1.astype(jnp.bfloat16).T,
                    preferred_element_type=jnp.float32) + b1
        bx = 500.0 * h
        h = jnp.where(bx > 20.0, h,
                      jnp.log1p(jnp.exp(jnp.minimum(bx, 20.0))) / 500.0)
        y = jnp.sum(h * w2.reshape(1, -1), axis=-1, keepdims=True) + b2
        return jax.nn.sigmoid(y)

    def ref_f32(xv):
        # Pure-f32 reference of the module math (semantics smoke check).
        h = xv @ w1.T + b1
        bx = 500.0 * h
        h = jnp.where(bx > 20.0, h,
                      jnp.log1p(jnp.exp(jnp.minimum(bx, 20.0))) / 500.0)
        return jax.nn.sigmoid(h @ w2.T + b2)

    out = jax.block_until_ready(sdenet_epistemic_forward(x, w1, b1, w2, b2))
    assert out.shape == (batch, 1)
    assert jnp.allclose(out, ref_mirror(x), atol=1e-4, rtol=1e-4)
    assert jnp.allclose(out, ref_f32(x), atol=5e-2, rtol=5e-2)

    # Multi-tile path with a partial trailing block (300 = 2*128 + 44) and
    # masked output writes.
    batch2 = 300
    x2 = jax.random.normal(jax.random.fold_in(key, 1), (batch2, d_in), jnp.float32)
    out2 = jax.block_until_ready(
        sdenet_epistemic_forward(x2, w1, b1, w2, b2, block_batch=128))
    assert out2.shape == (batch2, 1)
    assert jnp.allclose(out2, ref_mirror(x2), atol=1e-4, rtol=1e-4)

    print("KERNEL_OK")
</pallas_src>

<mosaic_0001>
module attributes {stable_mosaic.version = 11 : i64} {
  func.func @_sde_epistemic_kernel(%arg0: i32, %arg1: memref<17x128xf32, #tpu.memory_space<vmem>>, %arg2: memref<34x17xbf16, #tpu.memory_space<vmem>>, %arg3: memref<34x1xf32, #tpu.memory_space<vmem>>, %arg4: memref<34x1xf32, #tpu.memory_space<vmem>>, %arg5: memref<1xf32, #tpu.memory_space<smem>>, %arg6: memref<1x128xf32, #tpu.memory_space<vmem>>) attributes {dimension_semantics = [#tpu.dimension_semantics<parallel>], iteration_bounds = array<i64: 1>, scalar_prefetch = 0 : i64, scratch_operands = 0 : i64, tpu.core_type = #tpu.core_type<tc>, window_params = [{transform_indices = @transform_0, window_bounds = array<i64: 17, 128>}, {pipeline_mode = #tpu.pipeline_mode<synchronous>, transform_indices = @transform_1, window_bounds = array<i64: 34, 17>}, {pipeline_mode = #tpu.pipeline_mode<synchronous>, transform_indices = @transform_2, window_bounds = array<i64: 34, 1>}, {pipeline_mode = #tpu.pipeline_mode<synchronous>, transform_indices = @transform_3, window_bounds = array<i64: 34, 1>}, {transform_indices = @transform_4, window_bounds = array<i64: 1>}, {transform_indices = @transform_5, window_bounds = array<i64: 1, 128>}]} {
    %c0 = arith.constant 0 : index
    %c0_0 = arith.constant 0 : index
    %0 = vector.load %arg1[%c0, %c0_0] : memref<17x128xf32, #tpu.memory_space<vmem>>, vector<17x128xf32>
    %1 = arith.truncf %0 : vector<17x128xf32> to vector<17x128xbf16>
    %c0_1 = arith.constant 0 : index
    %c0_2 = arith.constant 0 : index
    %2 = vector.load %arg2[%c0_1, %c0_2] : memref<34x17xbf16, #tpu.memory_space<vmem>>, vector<34x17xbf16>
    %cst = arith.constant dense<0.000000e+00> : vector<34x128xf32>
    %3 = tpu.matmul %2, %1, %cst {dimension_numbers = #tpu.dot_dimension_numbers<[1], [0], [0], [1], [0, 0, 1, 1], [], []>} : vector<34x17xbf16>, vector<17x128xbf16>, vector<34x128xf32> -> vector<34x128xf32>
    %c0_3 = arith.constant 0 : index
    %c0_4 = arith.constant 0 : index
    %4 = vector.load %arg3[%c0_3, %c0_4] : memref<34x1xf32, #tpu.memory_space<vmem>>, vector<34x1xf32>
    %5 = vector.broadcast %4 : vector<34x1xf32> to vector<34x128xf32>
    %6 = arith.addf %3, %5 : vector<34x128xf32>
    %cst_5 = arith.constant 5.000000e+02 : f32
    %7 = vector.broadcast %cst_5 : f32 to vector<34x128xf32>
    %8 = arith.mulf %7, %6 : vector<34x128xf32>
    %cst_6 = arith.constant 2.000000e+01 : f32
    %9 = vector.broadcast %cst_6 : f32 to vector<34x128xf32>
    %10 = arith.minimumf %8, %9 : vector<34x128xf32>
    %11 = math.exp %10 : vector<34x128xf32>
    %12 = math.log1p %11 : vector<34x128xf32>
    %cst_7 = arith.constant 5.000000e+02 : f32
    %13 = vector.broadcast %cst_7 : f32 to vector<34x128xf32>
    %14 = arith.divf %12, %13 : vector<34x128xf32>
    %cst_8 = arith.constant 2.000000e+01 : f32
    %15 = vector.broadcast %cst_8 : f32 to vector<34x128xf32>
    %16 = arith.cmpf ogt, %8, %15 : vector<34x128xf32>
    %17 = arith.select %16, %6, %14 : vector<34x128xi1>, vector<34x128xf32>
    %c0_9 = arith.constant 0 : index
    %c0_10 = arith.constant 0 : index
    %18 = vector.load %arg4[%c0_9, %c0_10] : memref<34x1xf32, #tpu.memory_space<vmem>>, vector<34x1xf32>
    %19 = vector.broadcast %18 : vector<34x1xf32> to vector<34x128xf32>
    %20 = arith.mulf %17, %19 : vector<34x128xf32>
    %cst_11 = arith.constant dense<0.000000e+00> : vector<128xf32>
    %21 = vector.multi_reduction <add>, %20, %cst_11 [0] : vector<34x128xf32> to vector<128xf32>
    %22 = vector.shape_cast %21 : vector<128xf32> to vector<1x128xf32>
    %c0_12 = arith.constant 0 : index
    %23 = memref.load %arg5[%c0_12] : memref<1xf32, #tpu.memory_space<smem>>
    %24 = vector.broadcast %23 : f32 to vector<1x128xf32>
    %25 = arith.addf %22, %24 : vector<1x128xf32>
    %26 = arith.negf %25 : vector<1x128xf32>
    %27 = math.exp %26 : vector<1x128xf32>
    %cst_13 = arith.constant 1.000000e+00 : f32
    %28 = vector.broadcast %cst_13 : f32 to vector<1x128xf32>
    %29 = arith.addf %28, %27 : vector<1x128xf32>
    %30 = arith.divf %28, %29 : vector<1x128xf32>
    %c0_14 = arith.constant 0 : index
    %c0_15 = arith.constant 0 : index
    %31 = vector.load %arg6[%c0_14, %c0_15] : memref<1x128xf32, #tpu.memory_space<vmem>>, vector<1x128xf32>
    tpu.vector_store %arg6[%c0_14, %c0_15], %30 {strides = array<i32>} : memref<1x128xf32, #tpu.memory_space<vmem>>, vector<1x128xf32>,
    return
  }
  func.func @transform_0(%arg0: i32) -> (i32, i32) {
    %c0_i32 = arith.constant 0 : i32
    %c0_i32_0 = arith.constant 0 : i32
    return %c0_i32, %arg0 : i32, i32
  }
  func.func @transform_1(%arg0: i32) -> (i32, i32) {
    %c0_i32 = arith.constant 0 : i32
    %c0_i32_0 = arith.constant 0 : i32
    %c0_i32_1 = arith.constant 0 : i32
    return %c0_i32, %c0_i32_0 : i32, i32
  }
  func.func @transform_2(%arg0: i32) -> (i32, i32) {
    %c0_i32 = arith.constant 0 : i32
    %c0_i32_0 = arith.constant 0 : i32
    %c0_i32_1 = arith.constant 0 : i32
    return %c0_i32, %c0_i32_0 : i32, i32
  }
  func.func @transform_3(%arg0: i32) -> (i32, i32) {
    %c0_i32 = arith.constant 0 : i32
    %c0_i32_0 = arith.constant 0 : i32
    %c0_i32_1 = arith.constant 0 : i32
    return %c0_i32, %c0_i32_0 : i32, i32
  }
  func.func @transform_4(%arg0: i32) -> i32 {
    %c0_i32 = arith.constant 0 : i32
    %c0_i32_0 = arith.constant 0 : i32
    return %c0_i32 : i32
  }
  func.func @transform_5(%arg0: i32) -> (i32, i32) {
    %c0_i32 = arith.constant 0 : i32
    %c0_i32_0 = arith.constant 0 : i32
    return %c0_i32, %arg0 : i32, i32
  }
}

</mosaic_0001>

<llo_original>
// kernel: tpu_custom_call.1
$region0: #{tpu_custom_call.1}
  #allocation0 [shape = 'u32[]', space=smem, size = 0x4, offset = 0x4, fixed_abs, tag = 'smem constant byte address 0x4 - core index']
  #allocation1 [shape = 'u32[144,128]{1,0:T(1,128)}', space=vmem, size = 0x12000, scoped, tag = 'internal scratch']
  #allocation2 [shape = 'f32[1]{0:T(128)S(6)}', space=smem, size = 0x200, scoped, tag = 'scoped memory for tpu_custom_call.1']
  %s0 = inlined_call_operand.vmem [shape: f32[17,8], index: 0, kind: input, shape index: {}]
  %s1 = inlined_call_operand.vmem [shape: bf16[34,17], index: 1, kind: input, shape index: {}]
  %s2 = inlined_call_operand.vmem [shape: f32[34,1], index: 2, kind: input, shape index: {}]
  %s3 = inlined_call_operand.vmem [shape: f32[34,1], index: 3, kind: input, shape index: {}]
  %s4 = inlined_call_operand.<no memory space> [shape: f32[1], index: 4, kind: input, shape index: {}]
  %s5 = inlined_call_operand.hbm [shape: f32[1,8], index: 5, kind: output, shape index: {}]
  %s6 = sld [smem:[#allocation0]]
  $region30: #{tpu_custom_call.1} parent=0
    _
  %s8 = ssub.s32 1, %s6
  %s9 = scalar_select 0, %s8, %s6
  %10 = sst [smem:[#allocation2]] %s4
  $region1: #{tpu_custom_call.1} parent=0
    #allocation3 [shape = 'u8[512]{0}', space=vmem, size = 0x400, scoped, tag = 'output window, operand 0, single buffered']
    #allocation4 [shape = 's32[1]{0}', space=sflag, size = 0x4, scoped, tag = 'scoped memory for tpu_custom_call.1']
    %11 = vsyncpa [#allocation4], 0
    // Predicated region
    $region2: #{tpu_custom_call.1} parent=1 // pred_check
      _
    $region3: #{tpu_custom_call.1} parent=1 // pred_check_branch
      %13 = sbr.rel (0) target = $region5
    $region4: #{tpu_custom_call.1} parent=1 // pred_region
      _
    $region5: #{tpu_custom_call.1} parent=1 // pred_fallthru
      _
    // Predicated region
    $region6: #{tpu_custom_call.1} parent=1 // pred_check
      _
    $region7: #{tpu_custom_call.1} parent=1 // pred_check_branch
      %15 = sbr.rel (0) target = $region9
    $region8: #{tpu_custom_call.1} parent=1 // pred_region
      _
    $region9: #{tpu_custom_call.1} parent=1 // pred_fallthru
      _
    // Predicated region
    $region10: #{tpu_custom_call.1} parent=1 // pred_check
      _
    $region11: #{tpu_custom_call.1} parent=1 // pred_check_branch
      %17 = sbr.rel (0) target = $region13
    $region12: #{tpu_custom_call.1} parent=1 // pred_region
      _
    $region13: #{tpu_custom_call.1} parent=1 // pred_fallthru
      _
    // Predicated region
    $region14: #{tpu_custom_call.1} parent=1 // pred_check
      _
    $region15: #{tpu_custom_call.1} parent=1 // pred_check_branch
      %19 = sbr.rel (0) target = $region17
    $region16: #{tpu_custom_call.1} parent=1 // pred_region
      _
    $region17: #{tpu_custom_call.1} parent=1 // pred_fallthru
      _
    // Predicated region
    $region18: #{tpu_custom_call.1} parent=1 // pred_check
      _
    $region19: #{tpu_custom_call.1} parent=1 // pred_check_branch
      %21 = sbr.rel (0) target = $region21
    $region20: #{tpu_custom_call.1} parent=1 // pred_region
      _
    $region21: #{tpu_custom_call.1} parent=1 // pred_fallthru
      _
    %v23 = vld [vmem:[%s0] sm:$0xff]
    %v24 = vld [vmem:[%s0 + $0x8] sm:$0xff]
    %v25 = vld [vmem:[%s0 + $0x10] sm:$0x1]
    %v26 = vpack.c.bf16 %v24, %v23
    %v27 = vpack.c.bf16 %v25, %v25
    %v28 = vld [vmem:[%s1] sm:$0xf]
    %v29 = vld [vmem:[%s1 + $0x4] sm:$0xf]
    %v30 = vld [vmem:[%s1 + $0x8] sm:$0xf]
    %v31 = vld [vmem:[%s1 + $0xc] sm:$0xf]
    %v32 = vld [vmem:[%s1 + $0x10] sm:$0x1]
    %v33 = vld [vmem:[%s2] sm:$0xff]
    %v34 = vld [vmem:[%s2 + $0x8] sm:$0xff]
    %v35 = vld [vmem:[%s2 + $0x10] sm:$0xff]
    %v36 = vld [vmem:[%s2 + $0x18] sm:$0xff]
    %v37 = vld [vmem:[%s2 + $0x20] sm:$0x3]
    %39 = vset.pattern.permute.xlu0 0
    %40 = vperm.xlu0 %39, %v33
    %v41 = vpop.permute.xlu0 %40
    %44 = vset.pattern.permute.xlu0 0
    %45 = vperm.xlu0 %44, %v34
    %v46 = vpop.permute.xlu0 %45
    %49 = vset.pattern.permute.xlu0 0
    %50 = vperm.xlu0 %49, %v35
    %v51 = vpop.permute.xlu0 %50
    %54 = vset.pattern.permute.xlu0 0
    %55 = vperm.xlu0 %54, %v36
    %v56 = vpop.permute.xlu0 %55
    %59 = vset.pattern.permute.xlu0 0
    %60 = vperm.xlu0 %59, %v37
    %v61 = vpop.permute.xlu0 %60
    %v68 = vunpack.c.l.b16 %v28
    %v69 = vunpack.c.l.b16 %v29
    %v70 = vunpack.c.l.b16 %v30
    %v71 = vunpack.c.l.b16 %v31
    %v72 = vunpack.c.l.b16 %v32
    %v73 = vpack.c.b16 %v69, %v68
    %v74 = vpack.c.b16 %v71, %v70
    %v75 = vpack.c.b16 %v72, %v72
    %vm76 = vcmask 138240
    %v78 = vsel %vm76, %v73, 0
    %v81 = vsel %vm76, %v74, 0
    %v84 = vsel %vm76, %v75, 0
    %vm86 = vcmask 1040384
    %v87 = vsel 0, 4294967295, 65535
    %v88 = vsel %vm86, %v87, 0
    %v90 = vand.u32 %v27, %v88
    %92 = vmatprep.subr.bf16.mxu0 0
    %93 = vmatpush1.bf16.msra.mxu0 %v26
    %94 = vmatprep.subr.bf16.mxu0 0
    %95 = vmatpush1.bf16.msra.mxu0 %v90
    %96 = vmatprep.subr.bf16.mxu0 0
    %97 = vmatpush1.bf16.msra.mxu0 0
    %98 = vmatprep.subr.bf16.mxu0 0
    %99 = vmatpush1.bf16.msra.mxu0 0
    %100 = vmatprep.subr.bf16.mxu0 0
    %101 = vmatpush1.bf16.msra.mxu0 0
    %102 = vmatprep.subr.bf16.mxu0 0
    %103 = vmatpush1.bf16.msra.mxu0 0
    %104 = vmatprep.subr.bf16.mxu0 0
    %105 = vmatpush1.bf16.msra.mxu0 0
    %106 = vmatprep.subr.bf16.mxu0 0
    %107 = vmatpush1.bf16.msra.mxu0 0
    %108 = vmatprep.subr.bf16.mxu0 0
    %109 = vmatpush1.bf16.msra.mxu0 0
    %110 = vmatprep.subr.bf16.mxu0 0
    %111 = vmatpush1.bf16.msra.mxu0 0
    %112 = vmatprep.subr.bf16.mxu0 0
    %113 = vmatpush1.bf16.msra.mxu0 0
    %114 = vmatprep.subr.bf16.mxu0 0
    %115 = vmatpush1.bf16.msra.mxu0 0
    %116 = vmatprep.subr.bf16.mxu0 0
    %117 = vmatpush1.bf16.msra.mxu0 0
    %118 = vmatprep.subr.bf16.mxu0 0
    %119 = vmatpush1.bf16.msra.mxu0 0
    %120 = vmatprep.subr.bf16.mxu0 0
    %121 = vmatpush1.bf16.msra.mxu0 0
    %122 = vmatprep.subr.bf16.mxu0 0
    %123 = vmatpush1.bf16.msra.mxu0 0
    %124 = vmatprep.mubr.bf16.mxu0 0
    %125 = vmatmul.mubr.bf16.gmra.mrb[0].mxu0 %v78
    %v126 = vpop.f32.mrb[0].mxu0
    %v127 = vadd.f32 %v41, %v126
    %v128 = vpop.f32.mrb[0].mxu0
    %v129 = vpop.f32.mrb[0].mxu0
    %v130 = vadd.f32 %v46, %v129
    %v131 = vpop.f32.mrb[0].mxu0
    %132 = vmatprep.mubr.bf16.mxu0 0
    %133 = vmatmul.mubr.bf16.gmra.mrb[0].mxu0 %v81
    %v134 = vpop.f32.mrb[0].mxu0
    %v135 = vadd.f32 %v51, %v134
    %v136 = vpop.f32.mrb[0].mxu0
    %v137 = vpop.f32.mrb[0].mxu0
    %v138 = vadd.f32 %v56, %v137
    %v139 = vpop.f32.mrb[0].mxu0
    %140 = vmatprep.mubr.bf16.mxu0 0
    %141 = vmatmul.mubr.bf16.gmra.mrb[0].mxu0 %v84
    %v142 = vpop.f32.mrb[0].mxu0
    %v143 = vadd.f32 %v61, %v142
    %v144 = vpop.f32.mrb[0].mxu0
    %v145 = vpop.f32.mrb[0].mxu0
    %v146 = vpop.f32.mrb[0].mxu0
    %147 = vdwg.mxu0
    %v148 = vmul.f32 %v127, 500.0
    %v149 = vmul.f32 %v130, 500.0
    %v150 = vmul.f32 %v135, 500.0
    %v151 = vmul.f32 %v138, 500.0
    %v152 = vmul.f32 %v143, 500.0
    %v153 = vmin.f32 %v148, 20.0
    %v154 = vmin.f32 %v149, 20.0
    %v155 = vmin.f32 %v150, 20.0
    %v156 = vmin.f32 %v151, 20.0
    %v157 = vmin.f32 %v152, 20.0
    %v158 = vmul.f32 %v153, 1.442695
    %v159 = vpow.pop %v158
    %v160 = vmul.f32 %v154, 1.442695
    %v161 = vpow.pop %v160
    %v162 = vmul.f32 %v155, 1.442695
    %v163 = vpow.pop %v162
    %v164 = vmul.f32 %v156, 1.442695
    %v165 = vpow.pop %v164
    %v166 = vmul.f32 %v157, 1.442695
    %v167 = vpow.pop %v166
    %v168 = vadd.f32 %v159, 1.0
    %v169 = vlog2.pop %v168
    %v170 = vmul.f32 %v169, 0.6931472
    %v171 = vmul.f32 -0.5, %v159
    %v172 = vadd.f32 %v171, 1.0
    %v173 = vmul.f32 %v172, %v159
    %v174 = vand.u32 2147483647, %v159
    %vm175 = vcmp.lt.f32.partialorder %v174, 0.0004427343
    %v176 = vsel %vm175, %v173, %v170
    %v177 = vadd.f32 %v161, 1.0
    %v178 = vlog2.pop %v177
    %v179 = vmul.f32 %v178, 0.6931472
    %v180 = vmul.f32 -0.5, %v161
    %v181 = vadd.f32 %v180, 1.0
    %v182 = vmul.f32 %v181, %v161
    %v183 = vand.u32 2147483647, %v161
    %vm184 = vcmp.lt.f32.partialorder %v183, 0.0004427343
    %v185 = vsel %vm184, %v182, %v179
    %v186 = vadd.f32 %v163, 1.0
    %v187 = vlog2.pop %v186
    %v188 = vmul.f32 %v187, 0.6931472
    %v189 = vmul.f32 -0.5, %v163
    %v190 = vadd.f32 %v189, 1.0
    %v191 = vmul.f32 %v190, %v163
    %v192 = vand.u32 2147483647, %v163
    %vm193 = vcmp.lt.f32.partialorder %v192, 0.0004427343
    %v194 = vsel %vm193, %v191, %v188
    %v195 = vadd.f32 %v165, 1.0
    %v196 = vlog2.pop %v195
    %v197 = vmul.f32 %v196, 0.6931472
    %v198 = vmul.f32 -0.5, %v165
    %v199 = vadd.f32 %v198, 1.0
    %v200 = vmul.f32 %v199, %v165
    %v201 = vand.u32 2147483647, %v165
    %vm202 = vcmp.lt.f32.partialorder %v201, 0.0004427343
    %v203 = vsel %vm202, %v200, %v197
    %v204 = vadd.f32 %v167, 1.0
    %v205 = vlog2.pop %v204
    %v206 = vmul.f32 %v205, 0.6931472
    %v207 = vmul.f32 -0.5, %v167
    %v208 = vadd.f32 %v207, 1.0
    %v209 = vmul.f32 %v208, %v167
    %v210 = vand.u32 2147483647, %v167
    %vm211 = vcmp.lt.f32.partialorder %v210, 0.0004427343
    %v212 = vsel %vm211, %v209, %v206
    %v213 = vrcp.pop 500.0
    %v214 = vmul.f32 %v176, %v213
    %v215 = vmul.f32 %v185, %v213
    %v216 = vmul.f32 %v194, %v213
    %v217 = vmul.f32 %v203, %v213
    %v218 = vmul.f32 %v212, %v213
    %vm219 = vcmp.gt.f32.partialorder %v148, 20.0
    %vm220 = vcmp.gt.f32.partialorder %v149, 20.0
    %vm221 = vcmp.gt.f32.partialorder %v150, 20.0
    %vm222 = vcmp.gt.f32.partialorder %v151, 20.0
    %vm223 = vcmp.gt.f32.partialorder %v152, 20.0
    %v224 = vsel %vm219, %v127, %v214
    %v225 = vsel %vm220, %v130, %v215
    %v226 = vsel %vm221, %v135, %v216
    %v227 = vsel %vm222, %v138, %v217
    %v228 = vsel %vm223, %v143, %v218
    %v229 = vld [vmem:[%s3] sm:$0xff]
    %v230 = vld [vmem:[%s3 + $0x8] sm:$0xff]
    %v231 = vld [vmem:[%s3 + $0x10] sm:$0xff]
    %v232 = vld [vmem:[%s3 + $0x18] sm:$0xff]
    %v233 = vld [vmem:[%s3 + $0x20] sm:$0x3]
    %235 = vset.pattern.permute.xlu0 0
    %236 = vperm.xlu0 %235, %v229
    %v237 = vpop.permute.xlu0 %236
    %240 = vset.pattern.permute.xlu0 0
    %241 = vperm.xlu0 %240, %v230
    %v242 = vpop.permute.xlu0 %241
    %245 = vset.pattern.permute.xlu0 0
    %246 = vperm.xlu0 %245, %v231
    %v247 = vpop.permute.xlu0 %246
    %250 = vset.pattern.permute.xlu0 0
    %251 = vperm.xlu0 %250, %v232
    %v252 = vpop.permute.xlu0 %251
    %255 = vset.pattern.permute.xlu0 0
    %256 = vperm.xlu0 %255, %v233
    %v257 = vpop.permute.xlu0 %256
    %v259 = vmul.f32 %v224, %v237
    %v260 = vmul.f32 %v225, %v242
    %v261 = vmul.f32 %v226, %v247
    %v262 = vmul.f32 %v227, %v252
    %v263 = vmul.f32 %v228, %v257
    %v264 = vadd.f32 %v259, %v260
    %v265 = vadd.f32 %v264, %v261
    %v266 = vadd.f32 %v265, %v262
    %vm267 = vcmask 1041408
    %v268 = vsel %vm267, %v263, 0.0
    %v269 = vadd.f32 %v266, %v268
    %v270 = vrot.slane %v269, 4
    %v271 = vadd.f32 %v269, %v270
    %v272 = vrot.slane %v271, 2
    %v273 = vadd.f32 %v271, %v272
    %v274 = vrot.slane %v273, 1
    %v275 = vadd.f32 %v273, %v274
    %s276 = sld [smem:[#allocation2]]
    %v277 = vstv %s276
    %v278 = vadd.f32 %v275, %v277
    %v279 = vxor.u32 %v278, 2147483648
    %v280 = vmul.f32 %v279, 1.442695
    %v281 = vpow.pop %v280
    %v282 = vadd.f32 %v281, 1.0
    %v283 = vrcp.pop %v282
    %v284 = vmul.f32 1.0, %v283
    %285 = vst [vmem:[#allocation3] sm:$0x1] %v284
    // Predicated region
    $region22: #{tpu_custom_call.1} parent=1 // pred_check
      _
    $region23: #{tpu_custom_call.1} parent=1 // pred_check_branch
      %287 = sbr.rel (0) target = $region25
    $region24: #{tpu_custom_call.1} parent=1 // pred_region
      %s289 = ssub.s32 16, 16
      %290 = vsyncadd [#allocation4], %s289
      %s292 = sshll.u32 [#allocation3], 4
      %s293 = int_to_ptr.vmem [resolvable:$true] %s292
      %295 = dma.vmem_to_hbm [thread:$0]  %s293, 16, %s5, [#allocation4]
    $region25: #{tpu_custom_call.1} parent=1 // pred_fallthru
      _
    // Predicated region
    $region26: #{tpu_custom_call.1} parent=1 // pred_check
      _
    $region27: #{tpu_custom_call.1} parent=1 // pred_check_branch
      %297 = sbr.rel (0) target = $region29
    $region28: #{tpu_custom_call.1} parent=1 // pred_region
      %298 = dma.done [#allocation4], 16
    $region29: #{tpu_custom_call.1} parent=1 // pred_fallthru
      _
    %299 = vsyncpa [#allocation4], 1

</llo_original>
